<compile_context>
chip_gen: v7x
topology: tpu7x:2x2x1
jax: 0.10.0
libtpu: 0.0.40
codegen_flags: <defaults>
</compile_context>

<pallas_src>
import functools

import jax
import jax.numpy as jnp
from jax.experimental import pallas as pl
from jax.experimental.pallas import tpu as pltpu

_INV_SQRT2 = 0.7071067811865475


def _gelu_exact(v):
    # Matches torch.nn.GELU() default (erf-based, not tanh approximation).
    return 0.5 * v * (1.0 + jax.lax.erf(v * _INV_SQRT2))


def _round_up(x, m):
    return (x + m - 1) // m * m


def _pick_tile_b(B):
    """Largest batch tile that keeps grid >= 2 for big batches (v7x 2 TCs)."""
    if B <= 256:
        return B                      # single grid step for small batches
    for cand in (512, 256, 128, 64, 32, 16, 8):
        if B % cand == 0 and B // cand >= 2:
            return cand
    return B


def decoder_kernel(x_ref, win_ref, bin_ref, w1_ref, b1_ref, w2_ref, b2_ref,
                   wout_ref, bout_ref, o_ref, *, n_blocks, unroll):
    mxu_dt = win_ref.dtype            # bf16 (default) or f32

    # input layer: f32 accumulation on the MXU, f32 bias add
    h = jnp.dot(x_ref[...], win_ref[...],
                preferred_element_type=jnp.float32) + bin_ref[...]

    def resnet_block(i, h):
        # x_new = gelu(x + L2(gelu(L1(x))))
        t = _gelu_exact(
            jnp.dot(h.astype(mxu_dt), w1_ref[i],
                    preferred_element_type=jnp.float32) + b1_ref[i])
        t = (jnp.dot(t.astype(mxu_dt), w2_ref[i],
                     preferred_element_type=jnp.float32) + b2_ref[i])
        return _gelu_exact(h + t)

    if unroll:
        for i in range(n_blocks):     # static unroll: fine for few blocks
            h = resnet_block(i, h)
    else:
        # deep decoders: bounded vreg live ranges + dynamic weight indexing
        h = jax.lax.fori_loop(0, n_blocks, resnet_block, h)

    # output layer
    o_ref[...] = (jnp.dot(h.astype(mxu_dt), wout_ref[...],
                          preferred_element_type=jnp.float32)
                  + bout_ref[...]).astype(o_ref.dtype)


def decoder_forward(x, params, *, n_blocks, tile_b=None,
                    mxu_dtype=jnp.bfloat16, unroll_threshold=4):
    """x: (B, latent_dim) float32 -> (B, output_dim) float32."""
    win, bin_, w1, b1, w2, b2, wout, bout = params
    B, latent_dim = x.shape
    hidden_dim = win.shape[1]
    output_dim = wout.shape[1]

    if tile_b is None:
        tile_b = _pick_tile_b(B)
    assert B % tile_b == 0, (B, tile_b)

    # lane-dense (multiple-of-128) feature dims; zero padding is exact here
    lat_p = _round_up(latent_dim, 128)
    hid_p = _round_up(hidden_dim, 128)
    out_p = _round_up(output_dim, 128)

    def pad_last(a, target):
        p = target - a.shape[-1]
        if p == 0:
            return a
        return jnp.pad(a, [(0, 0)] * (a.ndim - 1) + [(0, p)])

    def pad_last2(a, t0, t1):
        p0, p1 = t0 - a.shape[-2], t1 - a.shape[-1]
        if p0 == 0 and p1 == 0:
            return a
        return jnp.pad(a, [(0, 0)] * (a.ndim - 2) + [(0, p0), (0, p1)])

    # MXU operands in mxu_dtype (bf16 by default); biases stay f32
    x_p = pad_last(x, lat_p).astype(mxu_dtype)
    win_p = pad_last2(win, lat_p, hid_p).astype(mxu_dtype)
    bin_p = pad_last(bin_.reshape(1, hidden_dim), hid_p).astype(jnp.float32)
    w1_p = pad_last2(w1, hid_p, hid_p).astype(mxu_dtype)
    b1_p = pad_last(b1.reshape(n_blocks, 1, hidden_dim), hid_p).astype(jnp.float32)
    w2_p = pad_last2(w2, hid_p, hid_p).astype(mxu_dtype)
    b2_p = pad_last(b2.reshape(n_blocks, 1, hidden_dim), hid_p).astype(jnp.float32)
    wout_p = pad_last2(wout, hid_p, out_p).astype(mxu_dtype)
    bout_p = pad_last(bout.reshape(1, output_dim), out_p).astype(jnp.float32)

    # VMEM budget (set an explicit limit only when above the 32 MiB scoped default)
    mxu_bytes = jnp.dtype(mxu_dtype).itemsize
    weight_bytes = ((win_p.size + w1_p.size + w2_p.size + wout_p.size) * mxu_bytes
                    + (bin_p.size + b1_p.size + b2_p.size + bout_p.size) * 4)
    act_bytes = 2 * tile_b * lat_p * mxu_bytes + 2 * tile_b * out_p * 4
    scratch_bytes = 4 * tile_b * hid_p * 4
    est = weight_bytes + act_bytes + scratch_bytes
    compiler_kwargs = dict(dimension_semantics=("parallel",))
    if est * 3 // 2 > (32 << 20):
        compiler_kwargs["vmem_limit_bytes"] = min(int(est * 3 // 2), 100 << 20)

    # grid-invariant operands: whole array resident in VMEM, single-buffered
    def vmem_full():
        return pl.BlockSpec(memory_space=pltpu.MemorySpace.VMEM)

    out_padded = pl.pallas_call(
        functools.partial(decoder_kernel, n_blocks=n_blocks,
                          unroll=(n_blocks <= unroll_threshold)),
        out_shape=jax.ShapeDtypeStruct((B, out_p), jnp.float32),
        grid_spec=pltpu.PrefetchScalarGridSpec(
            num_scalar_prefetch=0,
            grid=(B // tile_b,),
            in_specs=[
                pl.BlockSpec((tile_b, lat_p), lambda i: (i, 0)),  # x (pipelined)
                vmem_full(), vmem_full(),                         # win, bin
                vmem_full(), vmem_full(),                         # w1, b1
                vmem_full(), vmem_full(),                         # w2, b2
                vmem_full(), vmem_full(),                         # wout, bout
            ],
            out_specs=pl.BlockSpec((tile_b, out_p), lambda i: (i, 0)),
        ),
        compiler_params=pltpu.CompilerParams(**compiler_kwargs),
    )(x_p, win_p, bin_p, w1_p, b1_p, w2_p, b2_p, wout_p, bout_p)

    return out_padded[:, :output_dim]


def init_params(key, latent_dim, hidden_dim, output_dim, n_blocks):
    ks = jax.random.split(key, 8)
    s = 0.05
    win = s * jax.random.normal(ks[0], (latent_dim, hidden_dim), jnp.float32)
    bin_ = s * jax.random.normal(ks[1], (1, hidden_dim), jnp.float32)
    w1 = s * jax.random.normal(ks[2], (n_blocks, hidden_dim, hidden_dim), jnp.float32)
    b1 = s * jax.random.normal(ks[3], (n_blocks, hidden_dim), jnp.float32)
    w2 = s * jax.random.normal(ks[4], (n_blocks, hidden_dim, hidden_dim), jnp.float32)
    b2 = s * jax.random.normal(ks[5], (n_blocks, hidden_dim), jnp.float32)
    wout = s * jax.random.normal(ks[6], (hidden_dim, output_dim), jnp.float32)
    bout = s * jax.random.normal(ks[7], (1, output_dim), jnp.float32)
    return (win, bin_, w1, b1, w2, b2, wout, bout)


def decoder_reference(x, params, *, n_blocks):
    win, bin_, w1, b1, w2, b2, wout, bout = params
    h = x @ win + bin_
    for i in range(n_blocks):
        t = jax.nn.gelu(h @ w1[i] + b1[i], approximate=False)
        t = t @ w2[i] + b2[i]
        h = jax.nn.gelu(h + t, approximate=False)
    return h @ wout + bout


if __name__ == "__main__":
    batch = 16
    latent_dim = 32
    hidden_dim = 64
    output_dim = 16
    n_hidden_blocks = 2

    key = jax.random.PRNGKey(0)
    kx, kp = jax.random.split(key)
    x = jax.random.normal(kx, (batch, latent_dim), jnp.float32)
    params = init_params(kp, latent_dim, hidden_dim, output_dim, n_hidden_blocks)
    ref = decoder_reference(x, params, n_blocks=n_hidden_blocks)

    # 1) exact f32-MXU path: validates kernel math + zero-padding exactness
    out_f32 = decoder_forward(x, params, n_blocks=n_hidden_blocks,
                              mxu_dtype=jnp.float32)
    out_f32 = jax.block_until_ready(out_f32)
    assert out_f32.shape == (batch, output_dim)
    assert jnp.allclose(out_f32, ref, atol=1e-4, rtol=1e-4), "f32 mismatch vs reference"

    # 2) default bf16-MXU path (v6e/v7x-optimized); looser tolerance for bf16 operands
    out_bf16 = decoder_forward(x, params, n_blocks=n_hidden_blocks)
    out_bf16 = jax.block_until_ready(out_bf16)
    assert out_bf16.shape == (batch, output_dim)
    assert jnp.allclose(out_bf16, ref, atol=2e-2, rtol=2e-2), "bf16 mismatch vs reference"

    # 3) deep decoder exercising the fori_loop (non-unrolled) block path
    n_deep = 6
    params_deep = init_params(kp, latent_dim, hidden_dim, output_dim, n_deep)
    ref_deep = decoder_reference(x, params_deep, n_blocks=n_deep)
    out_deep = decoder_forward(x, params_deep, n_blocks=n_deep,
                               mxu_dtype=jnp.float32)
    out_deep = jax.block_until_ready(out_deep)
    assert jnp.allclose(out_deep, ref_deep, atol=1e-4, rtol=1e-4), "deep mismatch vs reference"

    print("KERNEL_OK")
</pallas_src>

<mosaic_0001>
module attributes {stable_mosaic.version = 11 : i64} {
  func.func @decoder_kernel(%arg0: i32, %arg1: memref<16x128xf32, #tpu.memory_space<vmem>>, %arg2: memref<128x128xf32, #tpu.memory_space<vmem>>, %arg3: memref<1x128xf32, #tpu.memory_space<vmem>>, %arg4: memref<2x128x128xf32, #tpu.memory_space<vmem>>, %arg5: memref<2x1x128xf32, #tpu.memory_space<vmem>>, %arg6: memref<2x128x128xf32, #tpu.memory_space<vmem>>, %arg7: memref<2x1x128xf32, #tpu.memory_space<vmem>>, %arg8: memref<128x128xf32, #tpu.memory_space<vmem>>, %arg9: memref<1x128xf32, #tpu.memory_space<vmem>>, %arg10: memref<16x128xf32, #tpu.memory_space<vmem>>) attributes {dimension_semantics = [#tpu.dimension_semantics<parallel>], iteration_bounds = array<i64: 1>, scalar_prefetch = 0 : i64, scratch_operands = 0 : i64, tpu.core_type = #tpu.core_type<tc>, window_params = [{transform_indices = @transform_0, window_bounds = array<i64: 16, 128>}, {pipeline_mode = #tpu.pipeline_mode<synchronous>, transform_indices = @transform_1, window_bounds = array<i64: 128, 128>}, {pipeline_mode = #tpu.pipeline_mode<synchronous>, transform_indices = @transform_2, window_bounds = array<i64: 1, 128>}, {pipeline_mode = #tpu.pipeline_mode<synchronous>, transform_indices = @transform_3, window_bounds = array<i64: 2, 128, 128>}, {pipeline_mode = #tpu.pipeline_mode<synchronous>, transform_indices = @transform_4, window_bounds = array<i64: 2, 1, 128>}, {pipeline_mode = #tpu.pipeline_mode<synchronous>, transform_indices = @transform_5, window_bounds = array<i64: 2, 128, 128>}, {pipeline_mode = #tpu.pipeline_mode<synchronous>, transform_indices = @transform_6, window_bounds = array<i64: 2, 1, 128>}, {pipeline_mode = #tpu.pipeline_mode<synchronous>, transform_indices = @transform_7, window_bounds = array<i64: 128, 128>}, {pipeline_mode = #tpu.pipeline_mode<synchronous>, transform_indices = @transform_8, window_bounds = array<i64: 1, 128>}, {transform_indices = @transform_9, window_bounds = array<i64: 16, 128>}]} {
    %c0 = arith.constant 0 : index
    %c0_0 = arith.constant 0 : index
    %0 = vector.load %arg1[%c0, %c0_0] : memref<16x128xf32, #tpu.memory_space<vmem>>, vector<16x128xf32>
    %c0_1 = arith.constant 0 : index
    %c0_2 = arith.constant 0 : index
    %1 = vector.load %arg2[%c0_1, %c0_2] : memref<128x128xf32, #tpu.memory_space<vmem>>, vector<128x128xf32>
    %cst = arith.constant dense<0.000000e+00> : vector<16x128xf32>
    %2 = tpu.matmul %0, %1, %cst {dimension_numbers = #tpu.dot_dimension_numbers<[1], [0], [0], [1], [0, 0, 1, 1], [], []>} : vector<16x128xf32>, vector<128x128xf32>, vector<16x128xf32> -> vector<16x128xf32>
    %c0_3 = arith.constant 0 : index
    %c0_4 = arith.constant 0 : index
    %3 = vector.load %arg3[%c0_3, %c0_4] : memref<1x128xf32, #tpu.memory_space<vmem>>, vector<1x128xf32>
    %4 = vector.broadcast %3 : vector<1x128xf32> to vector<16x128xf32>
    %5 = arith.addf %2, %4 : vector<16x128xf32>
    %c0_5 = arith.constant 0 : index
    %c0_6 = arith.constant 0 : index
    %c0_7 = arith.constant 0 : index
    %6 = vector.load %arg4[%c0_5, %c0_6, %c0_7] : memref<2x128x128xf32, #tpu.memory_space<vmem>>, vector<1x128x128xf32>
    %7 = vector.shape_cast %6 : vector<1x128x128xf32> to vector<128x128xf32>
    %cst_8 = arith.constant dense<0.000000e+00> : vector<16x128xf32>
    %8 = tpu.matmul %5, %7, %cst_8 {dimension_numbers = #tpu.dot_dimension_numbers<[1], [0], [0], [1], [0, 0, 1, 1], [], []>} : vector<16x128xf32>, vector<128x128xf32>, vector<16x128xf32> -> vector<16x128xf32>
    %c0_9 = arith.constant 0 : index
    %c0_10 = arith.constant 0 : index
    %c0_11 = arith.constant 0 : index
    %9 = vector.load %arg5[%c0_9, %c0_10, %c0_11] : memref<2x1x128xf32, #tpu.memory_space<vmem>>, vector<1x1x128xf32>
    %10 = vector.shape_cast %9 : vector<1x1x128xf32> to vector<1x128xf32>
    %11 = vector.broadcast %10 : vector<1x128xf32> to vector<16x128xf32>
    %12 = arith.addf %8, %11 : vector<16x128xf32>
    %cst_12 = arith.constant 5.000000e-01 : f32
    %13 = vector.broadcast %cst_12 : f32 to vector<16x128xf32>
    %14 = arith.mulf %13, %12 : vector<16x128xf32>
    %cst_13 = arith.constant 0.707106769 : f32
    %15 = vector.broadcast %cst_13 : f32 to vector<16x128xf32>
    %16 = arith.mulf %12, %15 : vector<16x128xf32>
    %17 = math.erf %16 : vector<16x128xf32>
    %cst_14 = arith.constant 1.000000e+00 : f32
    %18 = vector.broadcast %cst_14 : f32 to vector<16x128xf32>
    %19 = arith.addf %18, %17 : vector<16x128xf32>
    %20 = arith.mulf %14, %19 : vector<16x128xf32>
    %c0_15 = arith.constant 0 : index
    %c0_16 = arith.constant 0 : index
    %c0_17 = arith.constant 0 : index
    %21 = vector.load %arg6[%c0_15, %c0_16, %c0_17] : memref<2x128x128xf32, #tpu.memory_space<vmem>>, vector<1x128x128xf32>
    %22 = vector.shape_cast %21 : vector<1x128x128xf32> to vector<128x128xf32>
    %cst_18 = arith.constant dense<0.000000e+00> : vector<16x128xf32>
    %23 = tpu.matmul %20, %22, %cst_18 {dimension_numbers = #tpu.dot_dimension_numbers<[1], [0], [0], [1], [0, 0, 1, 1], [], []>} : vector<16x128xf32>, vector<128x128xf32>, vector<16x128xf32> -> vector<16x128xf32>
    %c0_19 = arith.constant 0 : index
    %c0_20 = arith.constant 0 : index
    %c0_21 = arith.constant 0 : index
    %24 = vector.load %arg7[%c0_19, %c0_20, %c0_21] : memref<2x1x128xf32, #tpu.memory_space<vmem>>, vector<1x1x128xf32>
    %25 = vector.shape_cast %24 : vector<1x1x128xf32> to vector<1x128xf32>
    %26 = vector.broadcast %25 : vector<1x128xf32> to vector<16x128xf32>
    %27 = arith.addf %23, %26 : vector<16x128xf32>
    %28 = arith.addf %5, %27 : vector<16x128xf32>
    %cst_22 = arith.constant 5.000000e-01 : f32
    %29 = vector.broadcast %cst_22 : f32 to vector<16x128xf32>
    %30 = arith.mulf %29, %28 : vector<16x128xf32>
    %cst_23 = arith.constant 0.707106769 : f32
    %31 = vector.broadcast %cst_23 : f32 to vector<16x128xf32>
    %32 = arith.mulf %28, %31 : vector<16x128xf32>
    %33 = math.erf %32 : vector<16x128xf32>
    %cst_24 = arith.constant 1.000000e+00 : f32
    %34 = vector.broadcast %cst_24 : f32 to vector<16x128xf32>
    %35 = arith.addf %34, %33 : vector<16x128xf32>
    %36 = arith.mulf %30, %35 : vector<16x128xf32>
    %c1 = arith.constant 1 : index
    %c0_25 = arith.constant 0 : index
    %c0_26 = arith.constant 0 : index
    %37 = vector.load %arg4[%c1, %c0_25, %c0_26] : memref<2x128x128xf32, #tpu.memory_space<vmem>>, vector<1x128x128xf32>
    %38 = vector.shape_cast %37 : vector<1x128x128xf32> to vector<128x128xf32>
    %cst_27 = arith.constant dense<0.000000e+00> : vector<16x128xf32>
    %39 = tpu.matmul %36, %38, %cst_27 {dimension_numbers = #tpu.dot_dimension_numbers<[1], [0], [0], [1], [0, 0, 1, 1], [], []>} : vector<16x128xf32>, vector<128x128xf32>, vector<16x128xf32> -> vector<16x128xf32>
    %c1_28 = arith.constant 1 : index
    %c0_29 = arith.constant 0 : index
    %c0_30 = arith.constant 0 : index
    %40 = vector.load %arg5[%c1_28, %c0_29, %c0_30] : memref<2x1x128xf32, #tpu.memory_space<vmem>>, vector<1x1x128xf32>
    %41 = vector.shape_cast %40 : vector<1x1x128xf32> to vector<1x128xf32>
    %42 = vector.broadcast %41 : vector<1x128xf32> to vector<16x128xf32>
    %43 = arith.addf %39, %42 : vector<16x128xf32>
    %cst_31 = arith.constant 5.000000e-01 : f32
    %44 = vector.broadcast %cst_31 : f32 to vector<16x128xf32>
    %45 = arith.mulf %44, %43 : vector<16x128xf32>
    %cst_32 = arith.constant 0.707106769 : f32
    %46 = vector.broadcast %cst_32 : f32 to vector<16x128xf32>
    %47 = arith.mulf %43, %46 : vector<16x128xf32>
    %48 = math.erf %47 : vector<16x128xf32>
    %cst_33 = arith.constant 1.000000e+00 : f32
    %49 = vector.broadcast %cst_33 : f32 to vector<16x128xf32>
    %50 = arith.addf %49, %48 : vector<16x128xf32>
    %51 = arith.mulf %45, %50 : vector<16x128xf32>
    %c1_34 = arith.constant 1 : index
    %c0_35 = arith.constant 0 : index
    %c0_36 = arith.constant 0 : index
    %52 = vector.load %arg6[%c1_34, %c0_35, %c0_36] : memref<2x128x128xf32, #tpu.memory_space<vmem>>, vector<1x128x128xf32>
    %53 = vector.shape_cast %52 : vector<1x128x128xf32> to vector<128x128xf32>
    %cst_37 = arith.constant dense<0.000000e+00> : vector<16x128xf32>
    %54 = tpu.matmul %51, %53, %cst_37 {dimension_numbers = #tpu.dot_dimension_numbers<[1], [0], [0], [1], [0, 0, 1, 1], [], []>} : vector<16x128xf32>, vector<128x128xf32>, vector<16x128xf32> -> vector<16x128xf32>
    %c1_38 = arith.constant 1 : index
    %c0_39 = arith.constant 0 : index
    %c0_40 = arith.constant 0 : index
    %55 = vector.load %arg7[%c1_38, %c0_39, %c0_40] : memref<2x1x128xf32, #tpu.memory_space<vmem>>, vector<1x1x128xf32>
    %56 = vector.shape_cast %55 : vector<1x1x128xf32> to vector<1x128xf32>
    %57 = vector.broadcast %56 : vector<1x128xf32> to vector<16x128xf32>
    %58 = arith.addf %54, %57 : vector<16x128xf32>
    %59 = arith.addf %36, %58 : vector<16x128xf32>
    %cst_41 = arith.constant 5.000000e-01 : f32
    %60 = vector.broadcast %cst_41 : f32 to vector<16x128xf32>
    %61 = arith.mulf %60, %59 : vector<16x128xf32>
    %cst_42 = arith.constant 0.707106769 : f32
    %62 = vector.broadcast %cst_42 : f32 to vector<16x128xf32>
    %63 = arith.mulf %59, %62 : vector<16x128xf32>
    %64 = math.erf %63 : vector<16x128xf32>
    %cst_43 = arith.constant 1.000000e+00 : f32
    %65 = vector.broadcast %cst_43 : f32 to vector<16x128xf32>
    %66 = arith.addf %65, %64 : vector<16x128xf32>
    %67 = arith.mulf %61, %66 : vector<16x128xf32>
    %c0_44 = arith.constant 0 : index
    %c0_45 = arith.constant 0 : index
    %68 = vector.load %arg8[%c0_44, %c0_45] : memref<128x128xf32, #tpu.memory_space<vmem>>, vector<128x128xf32>
    %cst_46 = arith.constant dense<0.000000e+00> : vector<16x128xf32>
    %69 = tpu.matmul %67, %68, %cst_46 {dimension_numbers = #tpu.dot_dimension_numbers<[1], [0], [0], [1], [0, 0, 1, 1], [], []>} : vector<16x128xf32>, vector<128x128xf32>, vector<16x128xf32> -> vector<16x128xf32>
    %c0_47 = arith.constant 0 : index
    %c0_48 = arith.constant 0 : index
    %70 = vector.load %arg9[%c0_47, %c0_48] : memref<1x128xf32, #tpu.memory_space<vmem>>, vector<1x128xf32>
    %71 = vector.broadcast %70 : vector<1x128xf32> to vector<16x128xf32>
    %72 = arith.addf %69, %71 : vector<16x128xf32>
    %c0_49 = arith.constant 0 : index
    %c0_50 = arith.constant 0 : index
    %73 = vector.load %arg10[%c0_49, %c0_50] : memref<16x128xf32, #tpu.memory_space<vmem>>, vector<16x128xf32>
    tpu.vector_store %arg10[%c0_49, %c0_50], %72 {strides = array<i32>} : memref<16x128xf32, #tpu.memory_space<vmem>>, vector<16x128xf32>,
    return
  }
  func.func @transform_0(%arg0: i32) -> (i32, i32) {
    %c0_i32 = arith.constant 0 : i32
    %c0_i32_0 = arith.constant 0 : i32
    return %arg0, %c0_i32 : i32, i32
  }
  func.func @transform_1(%arg0: i32) -> (i32, i32) {
    %c0_i32 = arith.constant 0 : i32
    %c0_i32_0 = arith.constant 0 : i32
    %c0_i32_1 = arith.constant 0 : i32
    return %c0_i32, %c0_i32_0 : i32, i32
  }
  func.func @transform_2(%arg0: i32) -> (i32, i32) {
    %c0_i32 = arith.constant 0 : i32
    %c0_i32_0 = arith.constant 0 : i32
    %c0_i32_1 = arith.constant 0 : i32
    return %c0_i32, %c0_i32_0 : i32, i32
  }
  func.func @transform_3(%arg0: i32) -> (i32, i32, i32) {
    %c0_i32 = arith.constant 0 : i32
    %c0_i32_0 = arith.constant 0 : i32
    %c0_i32_1 = arith.constant 0 : i32
    %c0_i32_2 = arith.constant 0 : i32
    return %c0_i32, %c0_i32_0, %c0_i32_1 : i32, i32, i32
  }
  func.func @transform_4(%arg0: i32) -> (i32, i32, i32) {
    %c0_i32 = arith.constant 0 : i32
    %c0_i32_0 = arith.constant 0 : i32
    %c0_i32_1 = arith.constant 0 : i32
    %c0_i32_2 = arith.constant 0 : i32
    return %c0_i32, %c0_i32_0, %c0_i32_1 : i32, i32, i32
  }
  func.func @transform_5(%arg0: i32) -> (i32, i32, i32) {
    %c0_i32 = arith.constant 0 : i32
    %c0_i32_0 = arith.constant 0 : i32
    %c0_i32_1 = arith.constant 0 : i32
    %c0_i32_2 = arith.constant 0 : i32
    return %c0_i32, %c0_i32_0, %c0_i32_1 : i32, i32, i32
  }
  func.func @transform_6(%arg0: i32) -> (i32, i32, i32) {
    %c0_i32 = arith.constant 0 : i32
    %c0_i32_0 = arith.constant 0 : i32
    %c0_i32_1 = arith.constant 0 : i32
    %c0_i32_2 = arith.constant 0 : i32
    return %c0_i32, %c0_i32_0, %c0_i32_1 : i32, i32, i32
  }
  func.func @transform_7(%arg0: i32) -> (i32, i32) {
    %c0_i32 = arith.constant 0 : i32
    %c0_i32_0 = arith.constant 0 : i32
    %c0_i32_1 = arith.constant 0 : i32
    return %c0_i32, %c0_i32_0 : i32, i32
  }
  func.func @transform_8(%arg0: i32) -> (i32, i32) {
    %c0_i32 = arith.constant 0 : i32
    %c0_i32_0 = arith.constant 0 : i32
    %c0_i32_1 = arith.constant 0 : i32
    return %c0_i32, %c0_i32_0 : i32, i32
  }
  func.func @transform_9(%arg0: i32) -> (i32, i32) {
    %c0_i32 = arith.constant 0 : i32
    %c0_i32_0 = arith.constant 0 : i32
    return %arg0, %c0_i32 : i32, i32
  }
}

</mosaic_0001>

<llo_original>
// kernel: tpu_custom_call.1
$region0: #{tpu_custom_call.1}
  #allocation0 [shape = 'u32[]', space=smem, size = 0x4, offset = 0x4, fixed_abs, tag = 'smem constant byte address 0x4 - core index']
  #allocation1 [shape = 'u32[144,128]{1,0:T(1,128)}', space=vmem, size = 0x12000, scoped, tag = 'internal scratch']
  %s0 = inlined_call_operand.hbm [shape: f32[16,128], index: 0, kind: input, shape index: {}]
  %s1 = inlined_call_operand.hbm [shape: f32[128,128], index: 1, kind: input, shape index: {}]
  %s2 = inlined_call_operand.vmem [shape: f32[1,128], index: 2, kind: input, shape index: {}]
  %s3 = inlined_call_operand.hbm [shape: f32[2,128,128], index: 3, kind: input, shape index: {}]
  %s4 = inlined_call_operand.vmem [shape: f32[2,1,128], index: 4, kind: input, shape index: {}]
  %s5 = inlined_call_operand.hbm [shape: f32[2,128,128], index: 5, kind: input, shape index: {}]
  %s6 = inlined_call_operand.vmem [shape: f32[2,1,128], index: 6, kind: input, shape index: {}]
  %s7 = inlined_call_operand.hbm [shape: f32[128,128], index: 7, kind: input, shape index: {}]
  %s8 = inlined_call_operand.vmem [shape: f32[1,128], index: 8, kind: input, shape index: {}]
  %s9 = inlined_call_operand.hbm [shape: f32[16,128], index: 9, kind: output, shape index: {}]
  %s10 = sld [smem:[#allocation0]]
  $region66: #{tpu_custom_call.1} parent=0
    _
  %s12 = ssub.s32 1, %s10
  %s13 = scalar_select 0, %s12, %s10
  $region1: #{tpu_custom_call.1} parent=0
    #allocation2 [shape = 'u8[8192]{0}', space=vmem, size = 0x2000, scoped, tag = 'input window, operand 0, single buffered']
    #allocation3 [shape = 's32[1]{0}', space=sflag, size = 0x4, scoped, tag = 'scoped memory for tpu_custom_call.1']
    #allocation4 [shape = 's32[1]{0}', space=sflag, size = 0x4, scoped, tag = 'scoped memory for tpu_custom_call.1']
    #allocation5 [shape = 'u8[65536]{0}', space=vmem, size = 0x10000, scoped, tag = 'input window, operand 1, single buffered']
    #allocation6 [shape = 's32[1]{0}', space=sflag, size = 0x4, scoped, tag = 'scoped memory for tpu_custom_call.1']
    #allocation7 [shape = 'u8[131072]{0}', space=vmem, size = 0x20000, scoped, tag = 'input window, operand 3, single buffered']
    #allocation8 [shape = 'u8[131072]{0}', space=vmem, size = 0x20000, scoped, tag = 'input window, operand 5, single buffered']
    #allocation9 [shape = 's32[1]{0}', space=sflag, size = 0x4, scoped, tag = 'scoped memory for tpu_custom_call.1']
    #allocation10 [shape = 'u8[65536]{0}', space=vmem, size = 0x10000, scoped, tag = 'input window, operand 7, single buffered']
    #allocation11 [shape = 'u8[8192]{0}', space=vmem, size = 0x2000, scoped, tag = 'output window, operand 0, single buffered']
    %14 = vsyncpa [#allocation3], 0
    %15 = vsyncpa [#allocation6], 0
    %16 = vsyncpa [#allocation9], 0
    %17 = vsyncpa [#allocation4], 0
    // Predicated region
    $region2: #{tpu_custom_call.1} parent=1 // pred_check
      _
    $region3: #{tpu_custom_call.1} parent=1 // pred_check_branch
      %19 = sbr.rel (0) target = $region5
    $region4: #{tpu_custom_call.1} parent=1 // pred_region
      %s21 = ssub.s32 256, 256
      %22 = vsyncadd [#allocation3], %s21
      %s23 = sshll.u32 [#allocation2], 4
      %s24 = int_to_ptr.vmem [resolvable:$true] %s23
      %29 = dma.hbm_to_vmem [thread:$0]  %s0, 256, %s24, [#allocation3], 128, 128, 8
    $region5: #{tpu_custom_call.1} parent=1 // pred_fallthru
      _
    // Predicated region
    $region6: #{tpu_custom_call.1} parent=1 // pred_check
      _
    $region7: #{tpu_custom_call.1} parent=1 // pred_check_branch
      %31 = sbr.rel (0) target = $region9
    $region8: #{tpu_custom_call.1} parent=1 // pred_region
      %s33 = ssub.s32 2048, 2048
      %34 = vsyncadd [#allocation6], %s33
      %s35 = sshll.u32 [#allocation5], 4
      %s36 = int_to_ptr.vmem [resolvable:$true] %s35
      %41 = dma.hbm_to_vmem [thread:$0]  %s1, 2048, %s36, [#allocation6], 128, 128, 8
    $region9: #{tpu_custom_call.1} parent=1 // pred_fallthru
      _
    // Predicated region
    $region10: #{tpu_custom_call.1} parent=1 // pred_check
      _
    $region11: #{tpu_custom_call.1} parent=1 // pred_check_branch
      %43 = sbr.rel (0) target = $region13
    $region12: #{tpu_custom_call.1} parent=1 // pred_region
      _
    $region13: #{tpu_custom_call.1} parent=1 // pred_fallthru
      _
    // Predicated region
    $region14: #{tpu_custom_call.1} parent=1 // pred_check
      _
    $region15: #{tpu_custom_call.1} parent=1 // pred_check_branch
      %45 = sbr.rel (0) target = $region17
    $region16: #{tpu_custom_call.1} parent=1 // pred_region
      %s47 = ssub.s32 4096, 4096
      %48 = vsyncadd [#allocation6], %s47
      %s49 = sshll.u32 [#allocation7], 4
      %s50 = int_to_ptr.vmem [resolvable:$true] %s49
      %55 = dma.hbm_to_vmem [thread:$0]  %s3, 4096, %s50, [#allocation6], 128, 128, 8
    $region17: #{tpu_custom_call.1} parent=1 // pred_fallthru
      _
    // Predicated region
    $region18: #{tpu_custom_call.1} parent=1 // pred_check
      _
    $region19: #{tpu_custom_call.1} parent=1 // pred_check_branch
      %57 = sbr.rel (0) target = $region21
    $region20: #{tpu_custom_call.1} parent=1 // pred_region
      _
    $region21: #{tpu_custom_call.1} parent=1 // pred_fallthru
      _
    // Predicated region
    $region22: #{tpu_custom_call.1} parent=1 // pred_check
      _
    $region23: #{tpu_custom_call.1} parent=1 // pred_check_branch
      %59 = sbr.rel (0) target = $region25
    $region24: #{tpu_custom_call.1} parent=1 // pred_region
      %s61 = ssub.s32 4096, 4096
      %62 = vsyncadd [#allocation9], %s61
      %s63 = sshll.u32 [#allocation8], 4
      %s64 = int_to_ptr.vmem [resolvable:$true] %s63
      %69 = dma.hbm_to_vmem [thread:$0]  %s5, 4096, %s64, [#allocation9], 128, 128, 8
    $region25: #{tpu_custom_call.1} parent=1 // pred_fallthru
      _
    // Predicated region
    $region26: #{tpu_custom_call.1} parent=1 // pred_check
      _
    $region27: #{tpu_custom_call.1} parent=1 // pred_check_branch
      %71 = sbr.rel (0) target = $region29
    $region28: #{tpu_custom_call.1} parent=1 // pred_region
      _
    $region29: #{tpu_custom_call.1} parent=1 // pred_fallthru
      _
    // Predicated region
    $region30: #{tpu_custom_call.1} parent=1 // pred_check
      _
    $region31: #{tpu_custom_call.1} parent=1 // pred_check_branch
      %73 = sbr.rel (0) target = $region33
    $region32: #{tpu_custom_call.1} parent=1 // pred_region
      %s75 = ssub.s32 2048, 2048
      %76 = vsyncadd [#allocation9], %s75
      %s77 = sshll.u32 [#allocation10], 4
      %s78 = int_to_ptr.vmem [resolvable:$true] %s77
      %83 = dma.hbm_to_vmem [thread:$0]  %s7, 2048, %s78, [#allocation9], 128, 128, 8
    $region33: #{tpu_custom_call.1} parent=1 // pred_fallthru
      _
    // Predicated region
    $region34: #{tpu_custom_call.1} parent=1 // pred_check
      _
    $region35: #{tpu_custom_call.1} parent=1 // pred_check_branch
      %85 = sbr.rel (0) target = $region37
    $region36: #{tpu_custom_call.1} parent=1 // pred_region
      _
    $region37: #{tpu_custom_call.1} parent=1 // pred_fallthru
      _
    // Predicated region
    $region38: #{tpu_custom_call.1} parent=1 // pred_check
      _
    $region39: #{tpu_custom_call.1} parent=1 // pred_check_branch
      %87 = sbr.rel (0) target = $region41
    $region40: #{tpu_custom_call.1} parent=1 // pred_region
      %88 = dma.done [#allocation3], 256
    $region41: #{tpu_custom_call.1} parent=1 // pred_fallthru
      _
    // Predicated region
    $region42: #{tpu_custom_call.1} parent=1 // pred_check
      _
    $region43: #{tpu_custom_call.1} parent=1 // pred_check_branch
      %90 = sbr.rel (0) target = $region45
    $region44: #{tpu_custom_call.1} parent=1 // pred_region
      %91 = dma.done [#allocation6], 2048
    $region45: #{tpu_custom_call.1} parent=1 // pred_fallthru
      _
    // Predicated region
    $region46: #{tpu_custom_call.1} parent=1 // pred_check
      _
    $region47: #{tpu_custom_call.1} parent=1 // pred_check_branch
      %93 = sbr.rel (0) target = $region49
    $region48: #{tpu_custom_call.1} parent=1 // pred_region
      %94 = dma.done [#allocation6], 4096
    $region49: #{tpu_custom_call.1} parent=1 // pred_fallthru
      _
    // Predicated region
    $region50: #{tpu_custom_call.1} parent=1 // pred_check
      _
    $region51: #{tpu_custom_call.1} parent=1 // pred_check_branch
      %96 = sbr.rel (0) target = $region53
    $region52: #{tpu_custom_call.1} parent=1 // pred_region
      %97 = dma.done [#allocation9], 4096
    $region53: #{tpu_custom_call.1} parent=1 // pred_fallthru
      _
    // Predicated region
    $region54: #{tpu_custom_call.1} parent=1 // pred_check
      _
    $region55: #{tpu_custom_call.1} parent=1 // pred_check_branch
      %99 = sbr.rel (0) target = $region57
    $region56: #{tpu_custom_call.1} parent=1 // pred_region
      %100 = dma.done [#allocation9], 2048
    $region57: #{tpu_custom_call.1} parent=1 // pred_fallthru
      _
    %v101 = vld [vmem:[#allocation2] sm:$0xff]
    %v102 = vld [vmem:[#allocation2 + $0x8] sm:$0xff]
    %v103 = vld [vmem:[#allocation5] sm:$0xff]
    %v104 = vld [vmem:[#allocation5 + $0x8] sm:$0xff]
    %v105 = vld [vmem:[#allocation5 + $0x10] sm:$0xff]
    %v106 = vld [vmem:[#allocation5 + $0x18] sm:$0xff]
    %v107 = vld [vmem:[#allocation5 + $0x20] sm:$0xff]
    %v108 = vld [vmem:[#allocation5 + $0x28] sm:$0xff]
    %v109 = vld [vmem:[#allocation5 + $0x30] sm:$0xff]
    %v110 = vld [vmem:[#allocation5 + $0x38] sm:$0xff]
    %v111 = vld [vmem:[#allocation5 + $0x40] sm:$0xff]
    %v112 = vld [vmem:[#allocation5 + $0x48] sm:$0xff]
    %v113 = vld [vmem:[#allocation5 + $0x50] sm:$0xff]
    %v114 = vld [vmem:[#allocation5 + $0x58] sm:$0xff]
    %v115 = vld [vmem:[#allocation5 + $0x60] sm:$0xff]
    %v116 = vld [vmem:[#allocation5 + $0x68] sm:$0xff]
    %v117 = vld [vmem:[#allocation5 + $0x70] sm:$0xff]
    %v118 = vld [vmem:[#allocation5 + $0x78] sm:$0xff]
    %v119 = vld [vmem:[%s2] sm:$0x1]
    %v121 = vlaneseq
    %v122 = vshrl.u32 %v121, 7
    %v123 = vsub.s32 0, %v122
    %v124 = vrot.slane %v119, %v123
    %126 = vmatprep.subr.mxu0 0.0
    %127 = vmatpush1.msra.mxu0 %v103
    %128 = vmatprep.subr.mxu0 0.0
    %129 = vmatpush1.msra.mxu0 %v104
    %130 = vmatprep.subr.mxu0 0.0
    %131 = vmatpush1.msra.mxu0 %v105
    %132 = vmatprep.subr.mxu0 0.0
    %133 = vmatpush1.msra.mxu0 %v106
    %134 = vmatprep.subr.mxu0 0.0
    %135 = vmatpush1.msra.mxu0 %v107
    %136 = vmatprep.subr.mxu0 0.0
    %137 = vmatpush1.msra.mxu0 %v108
    %138 = vmatprep.subr.mxu0 0.0
    %139 = vmatpush1.msra.mxu0 %v109
    %140 = vmatprep.subr.mxu0 0.0
    %141 = vmatpush1.msra.mxu0 %v110
    %142 = vmatprep.subr.mxu0 0.0
    %143 = vmatpush1.msra.mxu0 %v111
    %144 = vmatprep.subr.mxu0 0.0
    %145 = vmatpush1.msra.mxu0 %v112
    %146 = vmatprep.subr.mxu0 0.0
    %147 = vmatpush1.msra.mxu0 %v113
    %148 = vmatprep.subr.mxu0 0.0
    %149 = vmatpush1.msra.mxu0 %v114
    %150 = vmatprep.subr.mxu0 0.0
    %151 = vmatpush1.msra.mxu0 %v115
    %152 = vmatprep.subr.mxu0 0.0
    %153 = vmatpush1.msra.mxu0 %v116
    %154 = vmatprep.subr.mxu0 0.0
    %155 = vmatpush1.msra.mxu0 %v117
    %156 = vmatprep.subr.mxu0 0.0
    %157 = vmatpush1.msra.mxu0 %v118
    %158 = vmatprep.subr.mxu0 0.0
    %159 = vmatpush1.msra.mxu0 0.0
    %160 = vmatprep.subr.mxu0 0.0
    %161 = vmatpush1.msra.mxu0 0.0
    %162 = vmatprep.subr.mxu0 0.0
    %163 = vmatpush1.msra.mxu0 0.0
    %164 = vmatprep.subr.mxu0 0.0
    %165 = vmatpush1.msra.mxu0 0.0
    %166 = vmatprep.subr.mxu0 0.0
    %167 = vmatpush1.msra.mxu0 0.0
    %168 = vmatprep.subr.mxu0 0.0
    %169 = vmatpush1.msra.mxu0 0.0
    %170 = vmatprep.subr.mxu0 0.0
    %171 = vmatpush1.msra.mxu0 0.0
    %172 = vmatprep.subr.mxu0 0.0
    %173 = vmatpush1.msra.mxu0 0.0
    %174 = vmatprep.subr.mxu0 0.0
    %175 = vmatpush1.msra.mxu0 0.0
    %176 = vmatprep.subr.mxu0 0.0
    %177 = vmatpush1.msra.mxu0 0.0
    %178 = vmatprep.subr.mxu0 0.0
    %179 = vmatpush1.msra.mxu0 0.0
    %180 = vmatprep.subr.mxu0 0.0
    %181 = vmatpush1.msra.mxu0 0.0
    %182 = vmatprep.subr.mxu0 0.0
    %183 = vmatpush1.msra.mxu0 0.0
    %184 = vmatprep.subr.mxu0 0.0
    %185 = vmatpush1.msra.mxu0 0.0
    %186 = vmatprep.subr.mxu0 0.0
    %187 = vmatpush1.msra.mxu0 0.0
    %188 = vmatprep.subr.mxu0 0.0
    %189 = vmatpush1.msra.mxu0 0.0
    %190 = vmatprep.mubr.f32.mxu0 0.0
    %191 = vmatmul.mubr.f32.gmra.mrb[0].mxu0 %v101
    %v192 = vpop.f32.mrb[0].mxu0
    %v193 = vadd.f32 %v124, %v192
    %v194 = vpop.f32.mrb[0].mxu0
    %195 = vmatprep.mubr.f32.mxu0 0.0
    %196 = vmatmul.mubr.f32.gmra.mrb[0].mxu0 %v102
    %v197 = vpop.f32.mrb[0].mxu0
    %v198 = vadd.f32 %v124, %v197
    %v199 = vpop.f32.mrb[0].mxu0
    %200 = vdwg.mxu0
    %v201 = vld [vmem:[#allocation7] sm:$0xff]
    %v202 = vld [vmem:[#allocation7 + $0x8] sm:$0xff]
    %v203 = vld [vmem:[#allocation7 + $0x10] sm:$0xff]
    %v204 = vld [vmem:[#allocation7 + $0x18] sm:$0xff]
    %v205 = vld [vmem:[#allocation7 + $0x20] sm:$0xff]
    %v206 = vld [vmem:[#allocation7 + $0x28] sm:$0xff]
    %v207 = vld [vmem:[#allocation7 + $0x30] sm:$0xff]
    %v208 = vld [vmem:[#allocation7 + $0x38] sm:$0xff]
    %v209 = vld [vmem:[#allocation7 + $0x40] sm:$0xff]
    %v210 = vld [vmem:[#allocation7 + $0x48] sm:$0xff]
    %v211 = vld [vmem:[#allocation7 + $0x50] sm:$0xff]
    %v212 = vld [vmem:[#allocation7 + $0x58] sm:$0xff]
    %v213 = vld [vmem:[#allocation7 + $0x60] sm:$0xff]
    %v214 = vld [vmem:[#allocation7 + $0x68] sm:$0xff]
    %v215 = vld [vmem:[#allocation7 + $0x70] sm:$0xff]
    %v216 = vld [vmem:[#allocation7 + $0x78] sm:$0xff]
    %v217 = vld [vmem:[%s4] sm:$0x1]
    %v219 = vlaneseq
    %v220 = vshrl.u32 %v219, 7
    %v221 = vsub.s32 0, %v220
    %v222 = vrot.slane %v217, %v221
    %224 = vmatprep.subr.mxu0 0.0
    %225 = vmatpush1.msra.mxu0 %v201
    %226 = vmatprep.subr.mxu0 0.0
    %227 = vmatpush1.msra.mxu0 %v202
    %228 = vmatprep.subr.mxu0 0.0
    %229 = vmatpush1.msra.mxu0 %v203
    %230 = vmatprep.subr.mxu0 0.0
    %231 = vmatpush1.msra.mxu0 %v204
    %232 = vmatprep.subr.mxu0 0.0
    %233 = vmatpush1.msra.mxu0 %v205
    %234 = vmatprep.subr.mxu0 0.0
    %235 = vmatpush1.msra.mxu0 %v206
    %236 = vmatprep.subr.mxu0 0.0
    %237 = vmatpush1.msra.mxu0 %v207
    %238 = vmatprep.subr.mxu0 0.0
    %239 = vmatpush1.msra.mxu0 %v208
    %240 = vmatprep.subr.mxu0 0.0
    %241 = vmatpush1.msra.mxu0 %v209
    %242 = vmatprep.subr.mxu0 0.0
    %243 = vmatpush1.msra.mxu0 %v210
    %244 = vmatprep.subr.mxu0 0.0
    %245 = vmatpush1.msra.mxu0 %v211
    %246 = vmatprep.subr.mxu0 0.0
    %247 = vmatpush1.msra.mxu0 %v212
    %248 = vmatprep.subr.mxu0 0.0
    %249 = vmatpush1.msra.mxu0 %v213
    %250 = vmatprep.subr.mxu0 0.0
    %251 = vmatpush1.msra.mxu0 %v214
    %252 = vmatprep.subr.mxu0 0.0
    %253 = vmatpush1.msra.mxu0 %v215
    %254 = vmatprep.subr.mxu0 0.0
    %255 = vmatpush1.msra.mxu0 %v216
    %256 = vmatprep.subr.mxu0 0.0
    %257 = vmatpush1.msra.mxu0 0.0
    %258 = vmatprep.subr.mxu0 0.0
    %259 = vmatpush1.msra.mxu0 0.0
    %260 = vmatprep.subr.mxu0 0.0
    %261 = vmatpush1.msra.mxu0 0.0
    %262 = vmatprep.subr.mxu0 0.0
    %263 = vmatpush1.msra.mxu0 0.0
    %264 = vmatprep.subr.mxu0 0.0
    %265 = vmatpush1.msra.mxu0 0.0
    %266 = vmatprep.subr.mxu0 0.0
    %267 = vmatpush1.msra.mxu0 0.0
    %268 = vmatprep.subr.mxu0 0.0
    %269 = vmatpush1.msra.mxu0 0.0
    %270 = vmatprep.subr.mxu0 0.0
    %271 = vmatpush1.msra.mxu0 0.0
    %272 = vmatprep.subr.mxu0 0.0
    %273 = vmatpush1.msra.mxu0 0.0
    %274 = vmatprep.subr.mxu0 0.0
    %275 = vmatpush1.msra.mxu0 0.0
    %276 = vmatprep.subr.mxu0 0.0
    %277 = vmatpush1.msra.mxu0 0.0
    %278 = vmatprep.subr.mxu0 0.0
    %279 = vmatpush1.msra.mxu0 0.0
    %280 = vmatprep.subr.mxu0 0.0
    %281 = vmatpush1.msra.mxu0 0.0
    %282 = vmatprep.subr.mxu0 0.0
    %283 = vmatpush1.msra.mxu0 0.0
    %284 = vmatprep.subr.mxu0 0.0
    %285 = vmatpush1.msra.mxu0 0.0
    %286 = vmatprep.subr.mxu0 0.0
    %287 = vmatpush1.msra.mxu0 0.0
    %288 = vmatprep.mubr.f32.mxu0 0.0
    %289 = vmatmul.mubr.f32.gmra.mrb[0].mxu0 %v193
    %v290 = vpop.f32.mrb[0].mxu0
    %v291 = vadd.f32 %v222, %v290
    %v292 = vpop.f32.mrb[0].mxu0
    %293 = vmatprep.mubr.f32.mxu0 0.0
    %294 = vmatmul.mubr.f32.gmra.mrb[0].mxu0 %v198
    %v295 = vpop.f32.mrb[0].mxu0
    %v296 = vadd.f32 %v222, %v295
    %v297 = vpop.f32.mrb[0].mxu0
    %298 = vdwg.mxu0
    %v299 = vmul.f32 %v291, 0.5
    %v300 = vmul.f32 %v296, 0.5
    %v301 = vmul.f32 %v291, 0.70710677
    %v302 = vmul.f32 %v296, 0.70710677
    %v303 = verf.f32.pop %v301
    %v304 = verf.f32.pop %v302
    %v305 = vadd.f32 %v303, 1.0
    %v306 = vadd.f32 %v304, 1.0
    %v307 = vmul.f32 %v299, %v305
    %v308 = vmul.f32 %v300, %v306
    %v309 = vld [vmem:[#allocation8] sm:$0xff]
    %v310 = vld [vmem:[#allocation8 + $0x8] sm:$0xff]
    %v311 = vld [vmem:[#allocation8 + $0x10] sm:$0xff]
    %v312 = vld [vmem:[#allocation8 + $0x18] sm:$0xff]
    %v313 = vld [vmem:[#allocation8 + $0x20] sm:$0xff]
    %v314 = vld [vmem:[#allocation8 + $0x28] sm:$0xff]
    %v315 = vld [vmem:[#allocation8 + $0x30] sm:$0xff]
    %v316 = vld [vmem:[#allocation8 + $0x38] sm:$0xff]
    %v317 = vld [vmem:[#allocation8 + $0x40] sm:$0xff]
    %v318 = vld [vmem:[#allocation8 + $0x48] sm:$0xff]
    %v319 = vld [vmem:[#allocation8 + $0x50] sm:$0xff]
    %v320 = vld [vmem:[#allocation8 + $0x58] sm:$0xff]
    %v321 = vld [vmem:[#allocation8 + $0x60] sm:$0xff]
    %v322 = vld [vmem:[#allocation8 + $0x68] sm:$0xff]
    %v323 = vld [vmem:[#allocation8 + $0x70] sm:$0xff]
    %v324 = vld [vmem:[#allocation8 + $0x78] sm:$0xff]
    %v325 = vld [vmem:[%s6] sm:$0x1]
    %v327 = vlaneseq
    %v328 = vshrl.u32 %v327, 7
    %v329 = vsub.s32 0, %v328
    %v330 = vrot.slane %v325, %v329
    %332 = vmatprep.subr.mxu0 0.0
    %333 = vmatpush1.msra.mxu0 %v309
    %334 = vmatprep.subr.mxu0 0.0
    %335 = vmatpush1.msra.mxu0 %v310
    %336 = vmatprep.subr.mxu0 0.0
    %337 = vmatpush1.msra.mxu0 %v311
    %338 = vmatprep.subr.mxu0 0.0
    %339 = vmatpush1.msra.mxu0 %v312
    %340 = vmatprep.subr.mxu0 0.0
    %341 = vmatpush1.msra.mxu0 %v313
    %342 = vmatprep.subr.mxu0 0.0
    %343 = vmatpush1.msra.mxu0 %v314
    %344 = vmatprep.subr.mxu0 0.0
    %345 = vmatpush1.msra.mxu0 %v315
    %346 = vmatprep.subr.mxu0 0.0
    %347 = vmatpush1.msra.mxu0 %v316
    %348 = vmatprep.subr.mxu0 0.0
    %349 = vmatpush1.msra.mxu0 %v317
    %350 = vmatprep.subr.mxu0 0.0
    %351 = vmatpush1.msra.mxu0 %v318
    %352 = vmatprep.subr.mxu0 0.0
    %353 = vmatpush1.msra.mxu0 %v319
    %354 = vmatprep.subr.mxu0 0.0
    %355 = vmatpush1.msra.mxu0 %v320
    %356 = vmatprep.subr.mxu0 0.0
    %357 = vmatpush1.msra.mxu0 %v321
    %358 = vmatprep.subr.mxu0 0.0
    %359 = vmatpush1.msra.mxu0 %v322
    %360 = vmatprep.subr.mxu0 0.0
    %361 = vmatpush1.msra.mxu0 %v323
    %362 = vmatprep.subr.mxu0 0.0
    %363 = vmatpush1.msra.mxu0 %v324
    %364 = vmatprep.subr.mxu0 0.0
    %365 = vmatpush1.msra.mxu0 0.0
    %366 = vmatprep.subr.mxu0 0.0
    %367 = vmatpush1.msra.mxu0 0.0
    %368 = vmatprep.subr.mxu0 0.0
    %369 = vmatpush1.msra.mxu0 0.0
    %370 = vmatprep.subr.mxu0 0.0
    %371 = vmatpush1.msra.mxu0 0.0
    %372 = vmatprep.subr.mxu0 0.0
    %373 = vmatpush1.msra.mxu0 0.0
    %374 = vmatprep.subr.mxu0 0.0
    %375 = vmatpush1.msra.mxu0 0.0
    %376 = vmatprep.subr.mxu0 0.0
    %377 = vmatpush1.msra.mxu0 0.0
    %378 = vmatprep.subr.mxu0 0.0
    %379 = vmatpush1.msra.mxu0 0.0
    %380 = vmatprep.subr.mxu0 0.0
    %381 = vmatpush1.msra.mxu0 0.0
    %382 = vmatprep.subr.mxu0 0.0
    %383 = vmatpush1.msra.mxu0 0.0
    %384 = vmatprep.subr.mxu0 0.0
    %385 = vmatpush1.msra.mxu0 0.0
    %386 = vmatprep.subr.mxu0 0.0
    %387 = vmatpush1.msra.mxu0 0.0
    %388 = vmatprep.subr.mxu0 0.0
    %389 = vmatpush1.msra.mxu0 0.0
    %390 = vmatprep.subr.mxu0 0.0
    %391 = vmatpush1.msra.mxu0 0.0
    %392 = vmatprep.subr.mxu0 0.0
    %393 = vmatpush1.msra.mxu0 0.0
    %394 = vmatprep.subr.mxu0 0.0
    %395 = vmatpush1.msra.mxu0 0.0
    %396 = vmatprep.mubr.f32.mxu0 0.0
    %397 = vmatmul.mubr.f32.gmra.mrb[0].mxu0 %v307
    %v398 = vpop.f32.mrb[0].mxu0
    %v399 = vadd.f32 %v330, %v398
    %v400 = vpop.f32.mrb[0].mxu0
    %401 = vmatprep.mubr.f32.mxu0 0.0
    %402 = vmatmul.mubr.f32.gmra.mrb[0].mxu0 %v308
    %v403 = vpop.f32.mrb[0].mxu0
    %v404 = vadd.f32 %v330, %v403
    %v405 = vpop.f32.mrb[0].mxu0
    %406 = vdwg.mxu0
    %v407 = vadd.f32 %v193, %v399
    %v408 = vadd.f32 %v198, %v404
    %v409 = vmul.f32 %v407, 0.5
    %v410 = vmul.f32 %v408, 0.5
    %v411 = vmul.f32 %v407, 0.70710677
    %v412 = vmul.f32 %v408, 0.70710677
    %v413 = verf.f32.pop %v411
    %v414 = verf.f32.pop %v412
    %v415 = vadd.f32 %v413, 1.0
    %v416 = vadd.f32 %v414, 1.0
    %v417 = vmul.f32 %v409, %v415
    %v418 = vmul.f32 %v410, %v416
    %s419 = scalar_lea.vmem [#allocation7], 128
    %v420 = vld [vmem:[%s419] sm:$0xff]
    %v421 = vld [vmem:[%s419 + $0x8] sm:$0xff]
    %v422 = vld [vmem:[%s419 + $0x10] sm:$0xff]
    %v423 = vld [vmem:[%s419 + $0x18] sm:$0xff]
    %v424 = vld [vmem:[%s419 + $0x20] sm:$0xff]
    %v425 = vld [vmem:[%s419 + $0x28] sm:$0xff]
    %v426 = vld [vmem:[%s419 + $0x30] sm:$0xff]
    %v427 = vld [vmem:[%s419 + $0x38] sm:$0xff]
    %v428 = vld [vmem:[%s419 + $0x40] sm:$0xff]
    %v429 = vld [vmem:[%s419 + $0x48] sm:$0xff]
    %v430 = vld [vmem:[%s419 + $0x50] sm:$0xff]
    %v431 = vld [vmem:[%s419 + $0x58] sm:$0xff]
    %v432 = vld [vmem:[%s419 + $0x60] sm:$0xff]
    %v433 = vld [vmem:[%s419 + $0x68] sm:$0xff]
    %v434 = vld [vmem:[%s419 + $0x70] sm:$0xff]
    %v435 = vld [vmem:[%s419 + $0x78] sm:$0xff]
    %s436 = scalar_lea.vmem %s4, 1
    %v437 = vld [vmem:[%s436] sm:$0x1]
    %v439 = vlaneseq
    %v440 = vshrl.u32 %v439, 7
    %v441 = vsub.s32 0, %v440
    %v442 = vrot.slane %v437, %v441
    %444 = vmatprep.subr.mxu0 0.0
    %445 = vmatpush1.msra.mxu0 %v420
    %446 = vmatprep.subr.mxu0 0.0
    %447 = vmatpush1.msra.mxu0 %v421
    %448 = vmatprep.subr.mxu0 0.0
    %449 = vmatpush1.msra.mxu0 %v422
    %450 = vmatprep.subr.mxu0 0.0
    %451 = vmatpush1.msra.mxu0 %v423
    %452 = vmatprep.subr.mxu0 0.0
    %453 = vmatpush1.msra.mxu0 %v424
    %454 = vmatprep.subr.mxu0 0.0
    %455 = vmatpush1.msra.mxu0 %v425
    %456 = vmatprep.subr.mxu0 0.0
    %457 = vmatpush1.msra.mxu0 %v426
    %458 = vmatprep.subr.mxu0 0.0
    %459 = vmatpush1.msra.mxu0 %v427
    %460 = vmatprep.subr.mxu0 0.0
    %461 = vmatpush1.msra.mxu0 %v428
    %462 = vmatprep.subr.mxu0 0.0
    %463 = vmatpush1.msra.mxu0 %v429
    %464 = vmatprep.subr.mxu0 0.0
    %465 = vmatpush1.msra.mxu0 %v430
    %466 = vmatprep.subr.mxu0 0.0
    %467 = vmatpush1.msra.mxu0 %v431
    %468 = vmatprep.subr.mxu0 0.0
    %469 = vmatpush1.msra.mxu0 %v432
    %470 = vmatprep.subr.mxu0 0.0
    %471 = vmatpush1.msra.mxu0 %v433
    %472 = vmatprep.subr.mxu0 0.0
    %473 = vmatpush1.msra.mxu0 %v434
    %474 = vmatprep.subr.mxu0 0.0
    %475 = vmatpush1.msra.mxu0 %v435
    %476 = vmatprep.subr.mxu0 0.0
    %477 = vmatpush1.msra.mxu0 0.0
    %478 = vmatprep.subr.mxu0 0.0
    %479 = vmatpush1.msra.mxu0 0.0
    %480 = vmatprep.subr.mxu0 0.0
    %481 = vmatpush1.msra.mxu0 0.0
    %482 = vmatprep.subr.mxu0 0.0
    %483 = vmatpush1.msra.mxu0 0.0
    %484 = vmatprep.subr.mxu0 0.0
    %485 = vmatpush1.msra.mxu0 0.0
    %486 = vmatprep.subr.mxu0 0.0
    %487 = vmatpush1.msra.mxu0 0.0
    %488 = vmatprep.subr.mxu0 0.0
    %489 = vmatpush1.msra.mxu0 0.0
    %490 = vmatprep.subr.mxu0 0.0
    %491 = vmatpush1.msra.mxu0 0.0
    %492 = vmatprep.subr.mxu0 0.0
    %493 = vmatpush1.msra.mxu0 0.0
    %494 = vmatprep.subr.mxu0 0.0
    %495 = vmatpush1.msra.mxu0 0.0
    %496 = vmatprep.subr.mxu0 0.0
    %497 = vmatpush1.msra.mxu0 0.0
    %498 = vmatprep.subr.mxu0 0.0
    %499 = vmatpush1.msra.mxu0 0.0
    %500 = vmatprep.subr.mxu0 0.0
    %501 = vmatpush1.msra.mxu0 0.0
    %502 = vmatprep.subr.mxu0 0.0
    %503 = vmatpush1.msra.mxu0 0.0
    %504 = vmatprep.subr.mxu0 0.0
    %505 = vmatpush1.msra.mxu0 0.0
    %506 = vmatprep.subr.mxu0 0.0
    %507 = vmatpush1.msra.mxu0 0.0
    %508 = vmatprep.mubr.f32.mxu0 0.0
    %509 = vmatmul.mubr.f32.gmra.mrb[0].mxu0 %v417
    %v510 = vpop.f32.mrb[0].mxu0
    %v511 = vadd.f32 %v442, %v510
    %v512 = vpop.f32.mrb[0].mxu0
    %513 = vmatprep.mubr.f32.mxu0 0.0
    %514 = vmatmul.mubr.f32.gmra.mrb[0].mxu0 %v418
    %v515 = vpop.f32.mrb[0].mxu0
    %v516 = vadd.f32 %v442, %v515
    %v517 = vpop.f32.mrb[0].mxu0
    %518 = vdwg.mxu0
    %v519 = vmul.f32 %v511, 0.5
    %v520 = vmul.f32 %v516, 0.5
    %v521 = vmul.f32 %v511, 0.70710677
    %v522 = vmul.f32 %v516, 0.70710677
    %v523 = verf.f32.pop %v521
    %v524 = verf.f32.pop %v522
    %v525 = vadd.f32 %v523, 1.0
    %v526 = vadd.f32 %v524, 1.0
    %v527 = vmul.f32 %v519, %v525
    %v528 = vmul.f32 %v520, %v526
    %s529 = scalar_lea.vmem [#allocation8], 128
    %v530 = vld [vmem:[%s529] sm:$0xff]
    %v531 = vld [vmem:[%s529 + $0x8] sm:$0xff]
    %v532 = vld [vmem:[%s529 + $0x10] sm:$0xff]
    %v533 = vld [vmem:[%s529 + $0x18] sm:$0xff]
    %v534 = vld [vmem:[%s529 + $0x20] sm:$0xff]
    %v535 = vld [vmem:[%s529 + $0x28] sm:$0xff]
    %v536 = vld [vmem:[%s529 + $0x30] sm:$0xff]
    %v537 = vld [vmem:[%s529 + $0x38] sm:$0xff]
    %v538 = vld [vmem:[%s529 + $0x40] sm:$0xff]
    %v539 = vld [vmem:[%s529 + $0x48] sm:$0xff]
    %v540 = vld [vmem:[%s529 + $0x50] sm:$0xff]
    %v541 = vld [vmem:[%s529 + $0x58] sm:$0xff]
    %v542 = vld [vmem:[%s529 + $0x60] sm:$0xff]
    %v543 = vld [vmem:[%s529 + $0x68] sm:$0xff]
    %v544 = vld [vmem:[%s529 + $0x70] sm:$0xff]
    %v545 = vld [vmem:[%s529 + $0x78] sm:$0xff]
    %s546 = scalar_lea.vmem %s6, 1
    %v547 = vld [vmem:[%s546] sm:$0x1]
    %v549 = vlaneseq
    %v550 = vshrl.u32 %v549, 7
    %v551 = vsub.s32 0, %v550
    %v552 = vrot.slane %v547, %v551
    %554 = vmatprep.subr.mxu0 0.0
    %555 = vmatpush1.msra.mxu0 %v530
    %556 = vmatprep.subr.mxu0 0.0
    %557 = vmatpush1.msra.mxu0 %v531
    %558 = vmatprep.subr.mxu0 0.0
    %559 = vmatpush1.msra.mxu0 %v532
    %560 = vmatprep.subr.mxu0 0.0
    %561 = vmatpush1.msra.mxu0 %v533
    %562 = vmatprep.subr.mxu0 0.0
    %563 = vmatpush1.msra.mxu0 %v534
    %564 = vmatprep.subr.mxu0 0.0
    %565 = vmatpush1.msra.mxu0 %v535
    %566 = vmatprep.subr.mxu0 0.0
    %567 = vmatpush1.msra.mxu0 %v536
    %568 = vmatprep.subr.mxu0 0.0
    %569 = vmatpush1.msra.mxu0 %v537
    %570 = vmatprep.subr.mxu0 0.0
    %571 = vmatpush1.msra.mxu0 %v538
    %572 = vmatprep.subr.mxu0 0.0
    %573 = vmatpush1.msra.mxu0 %v539
    %574 = vmatprep.subr.mxu0 0.0
    %575 = vmatpush1.msra.mxu0 %v540
    %576 = vmatprep.subr.mxu0 0.0
    %577 = vmatpush1.msra.mxu0 %v541
    %578 = vmatprep.subr.mxu0 0.0
    %579 = vmatpush1.msra.mxu0 %v542
    %580 = vmatprep.subr.mxu0 0.0
    %581 = vmatpush1.msra.mxu0 %v543
    %582 = vmatprep.subr.mxu0 0.0
    %583 = vmatpush1.msra.mxu0 %v544
    %584 = vmatprep.subr.mxu0 0.0
    %585 = vmatpush1.msra.mxu0 %v545
    %586 = vmatprep.subr.mxu0 0.0
    %587 = vmatpush1.msra.mxu0 0.0
    %588 = vmatprep.subr.mxu0 0.0
    %589 = vmatpush1.msra.mxu0 0.0
    %590 = vmatprep.subr.mxu0 0.0
    %591 = vmatpush1.msra.mxu0 0.0
    %592 = vmatprep.subr.mxu0 0.0
    %593 = vmatpush1.msra.mxu0 0.0
    %594 = vmatprep.subr.mxu0 0.0
    %595 = vmatpush1.msra.mxu0 0.0
    %596 = vmatprep.subr.mxu0 0.0
    %597 = vmatpush1.msra.mxu0 0.0
    %598 = vmatprep.subr.mxu0 0.0
    %599 = vmatpush1.msra.mxu0 0.0
    %600 = vmatprep.subr.mxu0 0.0
    %601 = vmatpush1.msra.mxu0 0.0
    %602 = vmatprep.subr.mxu0 0.0
    %603 = vmatpush1.msra.mxu0 0.0
    %604 = vmatprep.subr.mxu0 0.0
    %605 = vmatpush1.msra.mxu0 0.0
    %606 = vmatprep.subr.mxu0 0.0
    %607 = vmatpush1.msra.mxu0 0.0
    %608 = vmatprep.subr.mxu0 0.0
    %609 = vmatpush1.msra.mxu0 0.0
    %610 = vmatprep.subr.mxu0 0.0
    %611 = vmatpush1.msra.mxu0 0.0
    %612 = vmatprep.subr.mxu0 0.0
    %613 = vmatpush1.msra.mxu0 0.0
    %614 = vmatprep.subr.mxu0 0.0
    %615 = vmatpush1.msra.mxu0 0.0
    %616 = vmatprep.subr.mxu0 0.0
    %617 = vmatpush1.msra.mxu0 0.0
    %618 = vmatprep.mubr.f32.mxu0 0.0
    %619 = vmatmul.mubr.f32.gmra.mrb[0].mxu0 %v527
    %v620 = vpop.f32.mrb[0].mxu0
    %v621 = vadd.f32 %v552, %v620
    %v622 = vpop.f32.mrb[0].mxu0
    %623 = vmatprep.mubr.f32.mxu0 0.0
    %624 = vmatmul.mubr.f32.gmra.mrb[0].mxu0 %v528
    %v625 = vpop.f32.mrb[0].mxu0
    %v626 = vadd.f32 %v552, %v625
    %v627 = vpop.f32.mrb[0].mxu0
    %628 = vdwg.mxu0
    %v629 = vadd.f32 %v417, %v621
    %v630 = vadd.f32 %v418, %v626
    %v631 = vmul.f32 %v629, 0.5
    %v632 = vmul.f32 %v630, 0.5
    %v633 = vmul.f32 %v629, 0.70710677
    %v634 = vmul.f32 %v630, 0.70710677
    %v635 = verf.f32.pop %v633
    %v636 = verf.f32.pop %v634
    %v637 = vadd.f32 %v635, 1.0
    %v638 = vadd.f32 %v636, 1.0
    %v639 = vmul.f32 %v631, %v637
    %v640 = vmul.f32 %v632, %v638
    %v641 = vld [vmem:[#allocation10] sm:$0xff]
    %v642 = vld [vmem:[#allocation10 + $0x8] sm:$0xff]
    %v643 = vld [vmem:[#allocation10 + $0x10] sm:$0xff]
    %v644 = vld [vmem:[#allocation10 + $0x18] sm:$0xff]
    %v645 = vld [vmem:[#allocation10 + $0x20] sm:$0xff]
    %v646 = vld [vmem:[#allocation10 + $0x28] sm:$0xff]
    %v647 = vld [vmem:[#allocation10 + $0x30] sm:$0xff]
    %v648 = vld [vmem:[#allocation10 + $0x38] sm:$0xff]
    %v649 = vld [vmem:[#allocation10 + $0x40] sm:$0xff]
    %v650 = vld [vmem:[#allocation10 + $0x48] sm:$0xff]
    %v651 = vld [vmem:[#allocation10 + $0x50] sm:$0xff]
    %v652 = vld [vmem:[#allocation10 + $0x58] sm:$0xff]
    %v653 = vld [vmem:[#allocation10 + $0x60] sm:$0xff]
    %v654 = vld [vmem:[#allocation10 + $0x68] sm:$0xff]
    %v655 = vld [vmem:[#allocation10 + $0x70] sm:$0xff]
    %v656 = vld [vmem:[#allocation10 + $0x78] sm:$0xff]
    %v657 = vld [vmem:[%s8] sm:$0x1]
    %v659 = vlaneseq
    %v660 = vshrl.u32 %v659, 7
    %v661 = vsub.s32 0, %v660
    %v662 = vrot.slane %v657, %v661
    %664 = vmatprep.subr.mxu0 0.0
    %665 = vmatpush1.msra.mxu0 %v641
    %666 = vmatprep.subr.mxu0 0.0
    %667 = vmatpush1.msra.mxu0 %v642
    %668 = vmatprep.subr.mxu0 0.0
    %669 = vmatpush1.msra.mxu0 %v643
    %670 = vmatprep.subr.mxu0 0.0
    %671 = vmatpush1.msra.mxu0 %v644
    %672 = vmatprep.subr.mxu0 0.0
    %673 = vmatpush1.msra.mxu0 %v645
    %674 = vmatprep.subr.mxu0 0.0
    %675 = vmatpush1.msra.mxu0 %v646
    %676 = vmatprep.subr.mxu0 0.0
    %677 = vmatpush1.msra.mxu0 %v647
    %678 = vmatprep.subr.mxu0 0.0
    %679 = vmatpush1.msra.mxu0 %v648
    %680 = vmatprep.subr.mxu0 0.0
    %681 = vmatpush1.msra.mxu0 %v649
    %682 = vmatprep.subr.mxu0 0.0
    %683 = vmatpush1.msra.mxu0 %v650
    %684 = vmatprep.subr.mxu0 0.0
    %685 = vmatpush1.msra.mxu0 %v651
    %686 = vmatprep.subr.mxu0 0.0
    %687 = vmatpush1.msra.mxu0 %v652
    %688 = vmatprep.subr.mxu0 0.0
    %689 = vmatpush1.msra.mxu0 %v653
    %690 = vmatprep.subr.mxu0 0.0
    %691 = vmatpush1.msra.mxu0 %v654
    %692 = vmatprep.subr.mxu0 0.0
    %693 = vmatpush1.msra.mxu0 %v655
    %694 = vmatprep.subr.mxu0 0.0
    %695 = vmatpush1.msra.mxu0 %v656
    %696 = vmatprep.subr.mxu0 0.0
    %697 = vmatpush1.msra.mxu0 0.0
    %698 = vmatprep.subr.mxu0 0.0
    %699 = vmatpush1.msra.mxu0 0.0
    %700 = vmatprep.subr.mxu0 0.0
    %701 = vmatpush1.msra.mxu0 0.0
    %702 = vmatprep.subr.mxu0 0.0
    %703 = vmatpush1.msra.mxu0 0.0
    %704 = vmatprep.subr.mxu0 0.0
    %705 = vmatpush1.msra.mxu0 0.0
    %706 = vmatprep.subr.mxu0 0.0
    %707 = vmatpush1.msra.mxu0 0.0
    %708 = vmatprep.subr.mxu0 0.0
    %709 = vmatpush1.msra.mxu0 0.0
    %710 = vmatprep.subr.mxu0 0.0
    %711 = vmatpush1.msra.mxu0 0.0
    %712 = vmatprep.subr.mxu0 0.0
    %713 = vmatpush1.msra.mxu0 0.0
    %714 = vmatprep.subr.mxu0 0.0
    %715 = vmatpush1.msra.mxu0 0.0
    %716 = vmatprep.subr.mxu0 0.0
    %717 = vmatpush1.msra.mxu0 0.0
    %718 = vmatprep.subr.mxu0 0.0
    %719 = vmatpush1.msra.mxu0 0.0
    %720 = vmatprep.subr.mxu0 0.0
    %721 = vmatpush1.msra.mxu0 0.0
    %722 = vmatprep.subr.mxu0 0.0
    %723 = vmatpush1.msra.mxu0 0.0
    %724 = vmatprep.subr.mxu0 0.0
    %725 = vmatpush1.msra.mxu0 0.0
    %726 = vmatprep.subr.mxu0 0.0
    %727 = vmatpush1.msra.mxu0 0.0
    %728 = vmatprep.mubr.f32.mxu0 0.0
    %729 = vmatmul.mubr.f32.gmra.mrb[0].mxu0 %v639
    %v730 = vpop.f32.mrb[0].mxu0
    %v731 = vadd.f32 %v662, %v730
    %v732 = vpop.f32.mrb[0].mxu0
    %733 = vmatprep.mubr.f32.mxu0 0.0
    %734 = vmatmul.mubr.f32.gmra.mrb[0].mxu0 %v640
    %v735 = vpop.f32.mrb[0].mxu0
    %v736 = vadd.f32 %v662, %v735
    %v737 = vpop.f32.mrb[0].mxu0
    %738 = vdwg.mxu0
    %739 = vst [vmem:[#allocation11] sm:$0xff] %v731
    %740 = vst [vmem:[#allocation11 + $0x8] sm:$0xff] %v736
    // Predicated region
    $region58: #{tpu_custom_call.1} parent=1 // pred_check
      _
    $region59: #{tpu_custom_call.1} parent=1 // pred_check_branch
      %742 = sbr.rel (0) target = $region61
    $region60: #{tpu_custom_call.1} parent=1 // pred_region
      %s744 = ssub.s32 256, 256
      %745 = vsyncadd [#allocation4], %s744
      %s746 = sshll.u32 [#allocation11], 4
      %s747 = int_to_ptr.vmem [resolvable:$true] %s746
      %752 = dma.vmem_to_hbm [thread:$0]  %s747, 256, %s9, [#allocation4], 128, 128, 8
    $region61: #{tpu_custom_call.1} parent=1 // pred_fallthru
      _
    // Predicated region
    $region62: #{tpu_custom_call.1} parent=1 // pred_check
      _
    $region63: #{tpu_custom_call.1} parent=1 // pred_check_branch
      %754 = sbr.rel (0) target = $region65
    $region64: #{tpu_custom_call.1} parent=1 // pred_region
      %755 = dma.done [#allocation4], 256
    $region65: #{tpu_custom_call.1} parent=1 // pred_fallthru
      _
    %756 = vsyncpa [#allocation3], 1
    %757 = vsyncpa [#allocation6], 1
    %758 = vsyncpa [#allocation9], 1
    %759 = vsyncpa [#allocation4], 1

</llo_original>
